<compile_context>
chip_gen: v7x
topology: tpu7x:2x2x1
jax: 0.10.0
libtpu: 0.0.40
codegen_flags: <defaults>
</compile_context>

<pallas_src>
import jax
import jax.numpy as jnp
from jax.experimental import pallas as pl
from jax.experimental.pallas import tpu as pltpu


def _attn_head_kernel(x_ref, w1_ref, fc1_w_ref, fc1_b_ref, fc_w_ref, fc_b_ref,
                      out_ref):
    """One batch tile, the FULL sequence in VMEM.

      scores[b,s] = sum_h tanh(x[b,s,h]) * w[:H][h]       (EUP tanh + VPU mul + lane reduce)
      alpha       = softmax_s(scores)                     (lane-dense: s on the lane axis)
      pooled[b]   = sum_s alpha[b,s] * x[b,s,:]           (VPU broadcast-mul + seq reduce)
      logits      = relu(pooled @ fc1_w + fc1_b) @ fc_w + fc_b   (MXU)
    """
    x = x_ref[...]                                            # (TB, S, H)
    xf = x.astype(jnp.float32)

    # Attention score.  The tanh(target)@w[H:] term cancels in the softmax.
    scores = jnp.sum(jnp.tanh(xf) * w1_ref[...], axis=-1)     # (TB, S) -> S on lanes

    # Plain single-pass softmax over the sequence (lane axis).
    m = jnp.max(scores, axis=-1, keepdims=True)               # (TB, 1)
    p = jnp.exp(scores - m)                                   # (TB, S)
    alpha = p * pl.reciprocal(jnp.sum(p, axis=-1, keepdims=True), approx=True)

    # Weighted pooling: broadcast multiply + sequence reduce (avoids degenerate
    # M=1 MXU matmuls; the VPU/XLU slots are idle while the EUP does tanh/exp).
    pooled = jnp.sum(alpha[:, :, None] * xf, axis=1)          # (TB, H)

    # TODO(synk): training-mode dropout mask not applied (inference identity).
    h = jnp.dot(pooled.astype(fc1_w_ref.dtype), fc1_w_ref[...],
                preferred_element_type=jnp.float32) + fc1_b_ref[...]
    h = jnp.maximum(h, 0.0)
    logits = jnp.dot(h.astype(fc_w_ref.dtype), fc_w_ref[...],
                     preferred_element_type=jnp.float32) + fc_b_ref[...]
    out_ref[...] = logits.astype(out_ref.dtype)


def model_head(x_emb, target_emb, w, fc1_w, fc1_b, fc_w, fc_b,
               *, block_b=None, lane_pad=128):
    """Everything after the BERT embeddings as one gridded Pallas call.

    `target_emb` is accepted for interface parity with the PyTorch module, but
    its score contribution (tanh(target) @ w[H:]) is a per-row constant that
    cancels inside the softmax over the sequence axis, so it is not needed.
    """
    del target_emb
    B, S, H = x_emb.shape
    H2 = fc1_w.shape[1]
    C = fc_w.shape[1]

    if block_b is None:
        # Keep >=2 parallel batch tiles when possible so both v7x TensorCores
        # get work; on v5e/v6e (1 TC) this costs nothing.
        block_b = B if B < 16 else min(B // 2, 128)
    block_b = min(block_b, B)
    assert B % block_b == 0, "batch must divide evenly into batch tiles"

    # Double-buffered x tile must stay well under v7x's 64 MiB physical VMEM.
    x_tile_bytes = 2 * block_b * S * H * x_emb.dtype.itemsize
    assert x_tile_bytes < 40 * 1024 * 1024, (
        "x tile too large for the v7x VMEM budget; lower block_b or tile S "
        "with an online softmax")

    # Only the first H entries of the 2H attention vector matter (see above).
    w1 = w[:H].astype(jnp.float32).reshape(1, 1, H)

    # Lane-dense classifier output: pad num_classes up to 128 lanes with zero
    # columns; logits are sliced back outside the kernel.
    cp = max(lane_pad, C)
    fc_w_p = jnp.zeros((H2, cp), fc_w.dtype).at[:, :C].set(fc_w)
    fc_b_p = jnp.zeros((1, cp), jnp.float32).at[:, :C].set(
        fc_b.astype(jnp.float32).reshape(1, C))
    fc1_b_r = fc1_b.astype(jnp.float32).reshape(1, H2)

    grid = (B // block_b,)

    out_padded = pl.pallas_call(
        _attn_head_kernel,
        out_shape=jax.ShapeDtypeStruct((B, cp), jnp.float32),
        grid_spec=pltpu.PrefetchScalarGridSpec(
            num_scalar_prefetch=0,
            grid=grid,
            in_specs=[
                pl.BlockSpec((block_b, S, H), lambda bi: (bi, 0, 0)),
                # Constant-index weight blocks: Pallas fetches them once and
                # does not re-DMA across grid steps.
                pl.BlockSpec((1, 1, H), lambda bi: (0, 0, 0)),
                pl.BlockSpec((H, H2), lambda bi: (0, 0)),
                pl.BlockSpec((1, H2), lambda bi: (0, 0)),
                pl.BlockSpec((H2, cp), lambda bi: (0, 0)),
                pl.BlockSpec((1, cp), lambda bi: (0, 0)),
            ],
            out_specs=pl.BlockSpec((block_b, cp), lambda bi: (bi, 0)),
        ),
        compiler_params=pltpu.CompilerParams(
            dimension_semantics=("parallel",),
            vmem_limit_bytes=48 * 1024 * 1024,
        ),
    )(x_emb, w1, fc1_w, fc1_b_r, fc_w_p, fc_b_p)
    return out_padded[:, :C]


def bert_stub(token_ids, emb_table, pool_w, pool_b):
    """Deterministic stand-in for BertModel (plain JAX glue).
    last_hidden_state := embedding lookup; pooler_output := tanh(h[:,0] @ W + b).
    """
    # TODO(synk): real pretrained BERT encoder is not reproducible in-script.
    last_hidden = emb_table[token_ids]                          # (B, S, H)
    pooled = jnp.tanh(last_hidden[:, 0, :] @ pool_w + pool_b)   # (B, H)
    return last_hidden, pooled


def forward(x_tuple, params):
    x_token, _, mask, target_token, target_mask = x_tuple
    # TODO(synk): attention_mask is consumed only by the (stubbed) BERT encoder,
    # matching the reference forward, which never masks the softmax over seq.
    x_emb, _ = bert_stub(x_token, params["emb"], params["pool_w"], params["pool_b"])
    _, target_emb = bert_stub(target_token, params["emb"],
                              params["pool_w"], params["pool_b"])
    return model_head(x_emb, target_emb, params["w"],
                      params["fc1_w"], params["fc1_b"],
                      params["fc_w"], params["fc_b"])


if __name__ == "__main__":
    # Small config consistent with the module: hidden_size=32, hidden_size2=16,
    # num_classes=3.  Batch/seq picked to exercise 2 parallel batch tiles.
    B, S, H, H2, C, VOCAB = 16, 16, 32, 16, 3, 30

    key = jax.random.PRNGKey(0)
    (k_emb, k_pw, k_pb, k_w, k_f1w, k_f1b,
     k_fw, k_fb, k_tok, k_ttok) = jax.random.split(key, 10)

    params = {
        "emb":    0.1 * jax.random.normal(k_emb, (VOCAB, H), jnp.float32),
        "pool_w": 0.1 * jax.random.normal(k_pw, (H, H), jnp.float32),
        "pool_b": 0.1 * jax.random.normal(k_pb, (H,), jnp.float32),
        # self.w is a zero-initialized *trainable* parameter in the module;
        # use a nonzero value so the attention path is exercised numerically.
        "w":      0.5 * jax.random.normal(k_w, (2 * H,), jnp.float32),
        "fc1_w":  0.1 * jax.random.normal(k_f1w, (H, H2), jnp.float32),
        "fc1_b":  0.1 * jax.random.normal(k_f1b, (H2,), jnp.float32),
        "fc_w":   0.1 * jax.random.normal(k_fw, (H2, C), jnp.float32),
        "fc_b":   0.1 * jax.random.normal(k_fb, (C,), jnp.float32),
    }

    x_token = jax.random.randint(k_tok, (B, S), 0, VOCAB)
    mask = jnp.ones((B, S), jnp.int32)
    target_token = jax.random.randint(k_ttok, (B, S), 0, VOCAB)
    target_mask = jnp.ones((B, S), jnp.int32)
    x_tuple = (x_token, x_token, mask, target_token, target_mask)

    out = forward(x_tuple, params)
    jax.block_until_ready(out)
    assert out.shape == (B, C)

    # Plain-JAX reference implementing the full PyTorch forward (including the
    # target-score branch, which cancels inside the softmax).
    x_emb, _ = bert_stub(x_token, params["emb"], params["pool_w"], params["pool_b"])
    _, tgt = bert_stub(target_token, params["emb"], params["pool_w"], params["pool_b"])
    e = jnp.concatenate([x_emb, jnp.tile(tgt[:, None, :], (1, S, 1))], axis=2)
    M = jnp.tanh(e)
    alpha = jax.nn.softmax(M @ params["w"], axis=1)[..., None]
    ref = jnp.sum(x_emb * alpha, axis=1)
    ref = jnp.maximum(ref @ params["fc1_w"] + params["fc1_b"], 0.0)
    ref = ref @ params["fc_w"] + params["fc_b"]
    assert jnp.allclose(out, ref, atol=5e-3, rtol=5e-3), (out, ref)

    print("KERNEL_OK")
</pallas_src>

<mosaic_0001>
module attributes {stable_mosaic.version = 11 : i64} {
  func.func @_attn_head_kernel(%arg0: i32, %arg1: memref<8x16x32xf32, #tpu.memory_space<vmem>>, %arg2: memref<1x1x32xf32, #tpu.memory_space<vmem>>, %arg3: memref<32x16xf32, #tpu.memory_space<vmem>>, %arg4: memref<1x16xf32, #tpu.memory_space<vmem>>, %arg5: memref<16x128xf32, #tpu.memory_space<vmem>>, %arg6: memref<1x128xf32, #tpu.memory_space<vmem>>, %arg7: memref<8x128xf32, #tpu.memory_space<vmem>>) attributes {dimension_semantics = [#tpu.dimension_semantics<parallel>], iteration_bounds = array<i64: 2>, scalar_prefetch = 0 : i64, scratch_operands = 0 : i64, tpu.core_type = #tpu.core_type<tc>, window_params = [{transform_indices = @transform_0, window_bounds = array<i64: 8, 16, 32>}, {pipeline_mode = #tpu.pipeline_mode<synchronous>, transform_indices = @transform_1, window_bounds = array<i64: 1, 1, 32>}, {pipeline_mode = #tpu.pipeline_mode<synchronous>, transform_indices = @transform_2, window_bounds = array<i64: 32, 16>}, {pipeline_mode = #tpu.pipeline_mode<synchronous>, transform_indices = @transform_3, window_bounds = array<i64: 1, 16>}, {pipeline_mode = #tpu.pipeline_mode<synchronous>, transform_indices = @transform_4, window_bounds = array<i64: 16, 128>}, {pipeline_mode = #tpu.pipeline_mode<synchronous>, transform_indices = @transform_5, window_bounds = array<i64: 1, 128>}, {transform_indices = @transform_6, window_bounds = array<i64: 8, 128>}]} {
    %c0 = arith.constant 0 : index
    %c0_0 = arith.constant 0 : index
    %c0_1 = arith.constant 0 : index
    %0 = vector.load %arg1[%c0, %c0_0, %c0_1] : memref<8x16x32xf32, #tpu.memory_space<vmem>>, vector<8x16x32xf32>
    %1 = math.tanh %0 : vector<8x16x32xf32>
    %c0_2 = arith.constant 0 : index
    %c0_3 = arith.constant 0 : index
    %c0_4 = arith.constant 0 : index
    %2 = vector.load %arg2[%c0_2, %c0_3, %c0_4] : memref<1x1x32xf32, #tpu.memory_space<vmem>>, vector<1x1x32xf32>
    %3 = vector.broadcast %2 : vector<1x1x32xf32> to vector<8x16x32xf32>
    %4 = arith.mulf %1, %3 : vector<8x16x32xf32>
    %cst = arith.constant dense<0.000000e+00> : vector<8x16xf32>
    %5 = vector.multi_reduction <add>, %4, %cst [2] : vector<8x16x32xf32> to vector<8x16xf32>
    %cst_5 = arith.constant dense<0xFF800000> : vector<8xf32>
    %6 = vector.multi_reduction <maximumf>, %5, %cst_5 [1] : vector<8x16xf32> to vector<8xf32>
    %7 = vector.shape_cast %6 : vector<8xf32> to vector<8x1xf32>
    %8 = vector.broadcast %7 : vector<8x1xf32> to vector<8x16xf32>
    %9 = arith.subf %5, %8 : vector<8x16xf32>
    %10 = math.exp %9 : vector<8x16xf32>
    %cst_6 = arith.constant dense<0.000000e+00> : vector<8xf32>
    %11 = vector.multi_reduction <add>, %10, %cst_6 [1] : vector<8x16xf32> to vector<8xf32>
    %12 = vector.shape_cast %11 : vector<8xf32> to vector<8x1xf32>
    %13 = tpu.reciprocal %12 {approx = true} : vector<8x1xf32> -> vector<8x1xf32>
    %14 = vector.broadcast %13 : vector<8x1xf32> to vector<8x16xf32>
    %15 = arith.mulf %10, %14 : vector<8x16xf32>
    %16 = vector.shape_cast %15 : vector<8x16xf32> to vector<8x16x1xf32>
    %17 = vector.broadcast %16 : vector<8x16x1xf32> to vector<8x16x32xf32>
    %18 = arith.mulf %17, %0 : vector<8x16x32xf32>
    %cst_7 = arith.constant dense<0.000000e+00> : vector<8x32xf32>
    %19 = vector.multi_reduction <add>, %18, %cst_7 [1] : vector<8x16x32xf32> to vector<8x32xf32>
    %c0_8 = arith.constant 0 : index
    %c0_9 = arith.constant 0 : index
    %20 = vector.load %arg3[%c0_8, %c0_9] : memref<32x16xf32, #tpu.memory_space<vmem>>, vector<32x16xf32>
    %cst_10 = arith.constant dense<0.000000e+00> : vector<8x16xf32>
    %21 = tpu.matmul %19, %20, %cst_10 {dimension_numbers = #tpu.dot_dimension_numbers<[1], [0], [0], [1], [0, 0, 1, 1], [], []>} : vector<8x32xf32>, vector<32x16xf32>, vector<8x16xf32> -> vector<8x16xf32>
    %c0_11 = arith.constant 0 : index
    %c0_12 = arith.constant 0 : index
    %22 = vector.load %arg4[%c0_11, %c0_12] : memref<1x16xf32, #tpu.memory_space<vmem>>, vector<1x16xf32>
    %23 = vector.broadcast %22 : vector<1x16xf32> to vector<8x16xf32>
    %24 = arith.addf %21, %23 : vector<8x16xf32>
    %cst_13 = arith.constant 0.000000e+00 : f32
    %25 = vector.broadcast %cst_13 : f32 to vector<8x16xf32>
    %26 = arith.maximumf %24, %25 : vector<8x16xf32>
    %c0_14 = arith.constant 0 : index
    %c0_15 = arith.constant 0 : index
    %27 = vector.load %arg5[%c0_14, %c0_15] : memref<16x128xf32, #tpu.memory_space<vmem>>, vector<16x128xf32>
    %cst_16 = arith.constant dense<0.000000e+00> : vector<8x128xf32>
    %28 = tpu.matmul %26, %27, %cst_16 {dimension_numbers = #tpu.dot_dimension_numbers<[1], [0], [0], [1], [0, 0, 1, 1], [], []>} : vector<8x16xf32>, vector<16x128xf32>, vector<8x128xf32> -> vector<8x128xf32>
    %c0_17 = arith.constant 0 : index
    %c0_18 = arith.constant 0 : index
    %29 = vector.load %arg6[%c0_17, %c0_18] : memref<1x128xf32, #tpu.memory_space<vmem>>, vector<1x128xf32>
    %30 = vector.broadcast %29 : vector<1x128xf32> to vector<8x128xf32>
    %31 = arith.addf %28, %30 : vector<8x128xf32>
    %c0_19 = arith.constant 0 : index
    %c0_20 = arith.constant 0 : index
    %32 = vector.load %arg7[%c0_19, %c0_20] : memref<8x128xf32, #tpu.memory_space<vmem>>, vector<8x128xf32>
    tpu.vector_store %arg7[%c0_19, %c0_20], %31 {strides = array<i32>} : memref<8x128xf32, #tpu.memory_space<vmem>>, vector<8x128xf32>,
    return
  }
  func.func @transform_0(%arg0: i32) -> (i32, i32, i32) {
    %c0_i32 = arith.constant 0 : i32
    %c0_i32_0 = arith.constant 0 : i32
    %c0_i32_1 = arith.constant 0 : i32
    return %arg0, %c0_i32, %c0_i32_0 : i32, i32, i32
  }
  func.func @transform_1(%arg0: i32) -> (i32, i32, i32) {
    %c0_i32 = arith.constant 0 : i32
    %c0_i32_0 = arith.constant 0 : i32
    %c0_i32_1 = arith.constant 0 : i32
    %c0_i32_2 = arith.constant 0 : i32
    return %c0_i32, %c0_i32_0, %c0_i32_1 : i32, i32, i32
  }
  func.func @transform_2(%arg0: i32) -> (i32, i32) {
    %c0_i32 = arith.constant 0 : i32
    %c0_i32_0 = arith.constant 0 : i32
    %c0_i32_1 = arith.constant 0 : i32
    return %c0_i32, %c0_i32_0 : i32, i32
  }
  func.func @transform_3(%arg0: i32) -> (i32, i32) {
    %c0_i32 = arith.constant 0 : i32
    %c0_i32_0 = arith.constant 0 : i32
    %c0_i32_1 = arith.constant 0 : i32
    return %c0_i32, %c0_i32_0 : i32, i32
  }
  func.func @transform_4(%arg0: i32) -> (i32, i32) {
    %c0_i32 = arith.constant 0 : i32
    %c0_i32_0 = arith.constant 0 : i32
    %c0_i32_1 = arith.constant 0 : i32
    return %c0_i32, %c0_i32_0 : i32, i32
  }
  func.func @transform_5(%arg0: i32) -> (i32, i32) {
    %c0_i32 = arith.constant 0 : i32
    %c0_i32_0 = arith.constant 0 : i32
    %c0_i32_1 = arith.constant 0 : i32
    return %c0_i32, %c0_i32_0 : i32, i32
  }
  func.func @transform_6(%arg0: i32) -> (i32, i32) {
    %c0_i32 = arith.constant 0 : i32
    %c0_i32_0 = arith.constant 0 : i32
    return %arg0, %c0_i32 : i32, i32
  }
}

</mosaic_0001>

<llo_original>
// kernel: tpu_custom_call.1
$region0: #{tpu_custom_call.1}
  #allocation0 [shape = 'u32[]', space=smem, size = 0x4, offset = 0x4, fixed_abs, tag = 'smem constant byte address 0x4 - core index']
  #allocation1 [shape = 'u32[144,128]{1,0:T(1,128)}', space=vmem, size = 0x12000, scoped, tag = 'internal scratch']
  %s0 = inlined_call_operand.hbm [shape: f32[16,16,32], index: 0, kind: input, shape index: {}]
  %s1 = inlined_call_operand.vmem [shape: f32[1,1,32], index: 1, kind: input, shape index: {}]
  %s2 = inlined_call_operand.vmem [shape: f32[32,16], index: 2, kind: input, shape index: {}]
  %s3 = inlined_call_operand.vmem [shape: f32[1,16], index: 3, kind: input, shape index: {}]
  %s4 = inlined_call_operand.vmem [shape: f32[16,128], index: 4, kind: input, shape index: {}]
  %s5 = inlined_call_operand.vmem [shape: f32[1,128], index: 5, kind: input, shape index: {}]
  %s6 = inlined_call_operand.hbm [shape: f32[16,128], index: 6, kind: output, shape index: {}]
  %s7 = sld [smem:[#allocation0]]
  $region61: #{tpu_custom_call.1} parent=0
    _
  %s9 = ssub.s32 1, %s7
  %s10 = scalar_select 0, %s9, %s7
  $region1: #{tpu_custom_call.1} parent=0
    #allocation2 [shape = 'u8[131072]{0}', space=vmem, size = 0x20000, scoped, tag = 'input window, operand 0']
    #allocation3 [shape = 's32[2]{0}', space=sflag, size = 0x8, scoped, tag = 'scoped memory for tpu_custom_call.1']
    #allocation4 [shape = 's32[2]{0}', space=sflag, size = 0x8, scoped, tag = 'scoped memory for tpu_custom_call.1']
    #allocation5 [shape = 'u8[8192]{0}', space=vmem, size = 0x2000, scoped, tag = 'output window, operand 0']
    %11 = vsyncpa [#allocation3], 0
    %s12 = scalar_lea.sflag [#allocation3], 1
    %13 = vsyncpa %s12, 0
    %14 = vsyncpa [#allocation4], 0
    %s15 = scalar_lea.sflag [#allocation4], 1
    %16 = vsyncpa %s15, 0
    loop: start=0, step=1, limit=4
    $region2: #{tpu_custom_call.1} parent=1 // loop_pre_header
      _
    $region3: #{tpu_custom_call.1} parent=1 // loop_header
      %s18 = sphi 0, %s22
      %p19 = scmp.ge.s32.totalorder %s18, 4
      %s28 = sphi 0, %s30
      %s31 = sphi 0, %s28
      %s32 = sphi 0, %s31
      %s48 = sphi 0, %s32
      %s52 = sphi 0, %s52
      %s54 = sphi 0, %s52
      %s55 = sphi 0, %s54
      %s69 = sphi 0, %s55
      %s73 = sphi 0, %s73
      %s75 = sphi 0, %s73
      %s76 = sphi 0, %s75
      %s90 = sphi 0, %s76
      %s94 = sphi 0, %s94
      %s96 = sphi 0, %s94
      %s97 = sphi 0, %s96
      %s111 = sphi 0, %s97
      %s115 = sphi 0, %s115
      %s117 = sphi 0, %s115
      %s118 = sphi 0, %s117
      %s132 = sphi 0, %s118
      %s136 = sphi 0, %s136
      %s138 = sphi 0, %s136
      %s139 = sphi 0, %s138
      %s153 = sphi 0, %s139
      %s159 = sphi 0, %s161
      %s162 = sphi 0, %s159
      %s163 = sphi 0, %s162
      %s179 = sphi 0, %s163
    $region4: #{tpu_custom_call.1} parent=1 // loop_header_branch
      %21 = sbr.rel (%p19) target = $region8
    $region5: #{tpu_custom_call.1} parent=1 // loop_body
      %s23 = ssub.s32 %s18, 1
      %s24 = ssub.s32 %s18, 2
      %s25 = sadd.s32 %s18, 1
      %s26 = ssub.s32 %s18, %s25
      %p27 = scmp.eq.s32.totalorder %s26, 0
      %s29 = sadd.s32 %s28, 1
      %s30 = scalar_select %p27, %s28, %s29
      %p33 = pneg %p27
      %p34 = scmp.eq.s32.totalorder %s18, 1
      %p35 = por %p33, %p34
      %p36 = scmp.ne.s32.totalorder %s28, %s31
      %p37 = scmp.eq.s32.totalorder %s18, 0
      %p38 = por %p36, %p37
      %p39 = scmp.ne.s32.totalorder %s28, %s31
      %p40 = scmp.eq.s32.totalorder %s23, 1
      %p41 = por %p39, %p40
      %p42 = scmp.ne.s32.totalorder %s31, %s32
      %p43 = scmp.eq.s32.totalorder %s23, 0
      %p44 = por %p42, %p43
      %p45 = scmp.ne.s32.totalorder %s31, %s32
      %p46 = scmp.eq.s32.totalorder %s24, 1
      %p47 = por %p45, %p46
      %p49 = scmp.ne.s32.totalorder %s32, %s48
      %p50 = scmp.eq.s32.totalorder %s24, 0
      %p51 = por %p49, %p50
      %s53 = sadd.s32 %s52, 1
      %p56 = scmp.eq.s32.totalorder %s18, 1
      %p57 = scmp.ne.s32.totalorder %s52, %s54
      %p58 = scmp.eq.s32.totalorder %s18, 0
      %p59 = por %p57, %p58
      %p60 = scmp.ne.s32.totalorder %s52, %s54
      %p61 = scmp.eq.s32.totalorder %s23, 1
      %p62 = por %p60, %p61
      %p63 = scmp.ne.s32.totalorder %s54, %s55
      %p64 = scmp.eq.s32.totalorder %s23, 0
      %p65 = por %p63, %p64
      %p66 = scmp.ne.s32.totalorder %s54, %s55
      %p67 = scmp.eq.s32.totalorder %s24, 1
      %p68 = por %p66, %p67
      %p70 = scmp.ne.s32.totalorder %s55, %s69
      %p71 = scmp.eq.s32.totalorder %s24, 0
      %p72 = por %p70, %p71
      %s74 = sadd.s32 %s73, 1
      %p77 = scmp.eq.s32.totalorder %s18, 1
      %p78 = scmp.ne.s32.totalorder %s73, %s75
      %p79 = scmp.eq.s32.totalorder %s18, 0
      %p80 = por %p78, %p79
      %p81 = scmp.ne.s32.totalorder %s73, %s75
      %p82 = scmp.eq.s32.totalorder %s23, 1
      %p83 = por %p81, %p82
      %p84 = scmp.ne.s32.totalorder %s75, %s76
      %p85 = scmp.eq.s32.totalorder %s23, 0
      %p86 = por %p84, %p85
      %p87 = scmp.ne.s32.totalorder %s75, %s76
      %p88 = scmp.eq.s32.totalorder %s24, 1
      %p89 = por %p87, %p88
      %p91 = scmp.ne.s32.totalorder %s76, %s90
      %p92 = scmp.eq.s32.totalorder %s24, 0
      %p93 = por %p91, %p92
      %s95 = sadd.s32 %s94, 1
      %p98 = scmp.eq.s32.totalorder %s18, 1
      %p99 = scmp.ne.s32.totalorder %s94, %s96
      %p100 = scmp.eq.s32.totalorder %s18, 0
      %p101 = por %p99, %p100
      %p102 = scmp.ne.s32.totalorder %s94, %s96
      %p103 = scmp.eq.s32.totalorder %s23, 1
      %p104 = por %p102, %p103
      %p105 = scmp.ne.s32.totalorder %s96, %s97
      %p106 = scmp.eq.s32.totalorder %s23, 0
      %p107 = por %p105, %p106
      %p108 = scmp.ne.s32.totalorder %s96, %s97
      %p109 = scmp.eq.s32.totalorder %s24, 1
      %p110 = por %p108, %p109
      %p112 = scmp.ne.s32.totalorder %s97, %s111
      %p113 = scmp.eq.s32.totalorder %s24, 0
      %p114 = por %p112, %p113
      %s116 = sadd.s32 %s115, 1
      %p119 = scmp.eq.s32.totalorder %s18, 1
      %p120 = scmp.ne.s32.totalorder %s115, %s117
      %p121 = scmp.eq.s32.totalorder %s18, 0
      %p122 = por %p120, %p121
      %p123 = scmp.ne.s32.totalorder %s115, %s117
      %p124 = scmp.eq.s32.totalorder %s23, 1
      %p125 = por %p123, %p124
      %p126 = scmp.ne.s32.totalorder %s117, %s118
      %p127 = scmp.eq.s32.totalorder %s23, 0
      %p128 = por %p126, %p127
      %p129 = scmp.ne.s32.totalorder %s117, %s118
      %p130 = scmp.eq.s32.totalorder %s24, 1
      %p131 = por %p129, %p130
      %p133 = scmp.ne.s32.totalorder %s118, %s132
      %p134 = scmp.eq.s32.totalorder %s24, 0
      %p135 = por %p133, %p134
      %s137 = sadd.s32 %s136, 1
      %p140 = scmp.eq.s32.totalorder %s18, 1
      %p141 = scmp.ne.s32.totalorder %s136, %s138
      %p142 = scmp.eq.s32.totalorder %s18, 0
      %p143 = por %p141, %p142
      %p144 = scmp.ne.s32.totalorder %s136, %s138
      %p145 = scmp.eq.s32.totalorder %s23, 1
      %p146 = por %p144, %p145
      %p147 = scmp.ne.s32.totalorder %s138, %s139
      %p148 = scmp.eq.s32.totalorder %s23, 0
      %p149 = por %p147, %p148
      %p150 = scmp.ne.s32.totalorder %s138, %s139
      %p151 = scmp.eq.s32.totalorder %s24, 1
      %p152 = por %p150, %p151
      %p154 = scmp.ne.s32.totalorder %s139, %s153
      %p155 = scmp.eq.s32.totalorder %s24, 0
      %p156 = por %p154, %p155
      %s157 = ssub.s32 %s18, %s25
      %p158 = scmp.eq.s32.totalorder %s157, 0
      %s160 = sadd.s32 %s159, 1
      %s161 = scalar_select %p158, %s159, %s160
      %p164 = pneg %p158
      %p165 = scmp.eq.s32.totalorder %s18, 1
      %p166 = por %p164, %p165
      %p167 = scmp.ne.s32.totalorder %s159, %s162
      %p168 = scmp.eq.s32.totalorder %s18, 0
      %p169 = por %p167, %p168
      %p170 = scmp.ne.s32.totalorder %s159, %s162
      %p171 = scmp.eq.s32.totalorder %s23, 1
      %p172 = por %p170, %p171
      %p173 = scmp.ne.s32.totalorder %s162, %s163
      %p174 = scmp.eq.s32.totalorder %s23, 0
      %p175 = por %p173, %p174
      %p176 = scmp.ne.s32.totalorder %s162, %s163
      %p177 = scmp.eq.s32.totalorder %s24, 1
      %p178 = por %p176, %p177
      %p180 = scmp.ne.s32.totalorder %s163, %s179
      %p181 = scmp.eq.s32.totalorder %s24, 0
      %p182 = por %p180, %p181
      %p183 = scmp.le.s32.totalorder 1, %s18
      %p184 = scmp.lt.s32.totalorder %s18, 3
      %p185 = pnand %p183, %p184
      %p186 = pneg %p185
      // Predicated region
      $region9: #{tpu_custom_call.1} parent=5 // pred_check
        _
      $region10: #{tpu_custom_call.1} parent=5 // pred_check_branch
        %188 = sbr.rel (%p185) target = $region12
      $region11: #{tpu_custom_call.1} parent=5 // pred_region
        %s189 = ssub.s32 %s18, 1
        // Predicated region
        $region13: #{tpu_custom_call.1} parent=11 // pred_check
          %p190 = pneg %p65
        $region14: #{tpu_custom_call.1} parent=11 // pred_check_branch
          %192 = sbr.rel (%p190) target = $region16
        $region15: #{tpu_custom_call.1} parent=11 // pred_region
          _
        $region16: #{tpu_custom_call.1} parent=11 // pred_fallthru
          _
        // Predicated region
        $region17: #{tpu_custom_call.1} parent=11 // pred_check
          %p193 = pneg %p86
        $region18: #{tpu_custom_call.1} parent=11 // pred_check_branch
          %195 = sbr.rel (%p193) target = $region20
        $region19: #{tpu_custom_call.1} parent=11 // pred_region
          _
        $region20: #{tpu_custom_call.1} parent=11 // pred_fallthru
          _
        // Predicated region
        $region21: #{tpu_custom_call.1} parent=11 // pred_check
          %p196 = pneg %p107
        $region22: #{tpu_custom_call.1} parent=11 // pred_check_branch
          %198 = sbr.rel (%p196) target = $region24
        $region23: #{tpu_custom_call.1} parent=11 // pred_region
          _
        $region24: #{tpu_custom_call.1} parent=11 // pred_fallthru
          _
        // Predicated region
        $region25: #{tpu_custom_call.1} parent=11 // pred_check
          %p199 = pneg %p128
        $region26: #{tpu_custom_call.1} parent=11 // pred_check_branch
          %201 = sbr.rel (%p199) target = $region28
        $region27: #{tpu_custom_call.1} parent=11 // pred_region
          _
        $region28: #{tpu_custom_call.1} parent=11 // pred_fallthru
          _
        // Predicated region
        $region29: #{tpu_custom_call.1} parent=11 // pred_check
          %p202 = pneg %p149
        $region30: #{tpu_custom_call.1} parent=11 // pred_check_branch
          %204 = sbr.rel (%p202) target = $region32
        $region31: #{tpu_custom_call.1} parent=11 // pred_region
          _
        $region32: #{tpu_custom_call.1} parent=11 // pred_fallthru
          _
      $region12: #{tpu_custom_call.1} parent=5 // pred_fallthru
        _
      %p205 = scmp.lt.s32.totalorder %s18, 2
      // Predicated region
      $region33: #{tpu_custom_call.1} parent=5 // pred_check
        %p206 = pneg %p205
      $region34: #{tpu_custom_call.1} parent=5 // pred_check_branch
        %208 = sbr.rel (%p206) target = $region36
      $region35: #{tpu_custom_call.1} parent=5 // pred_region
        // Predicated region
        $region37: #{tpu_custom_call.1} parent=35 // pred_check
          %p209 = pneg %p38
        $region38: #{tpu_custom_call.1} parent=35 // pred_check_branch
          %211 = sbr.rel (%p209) target = $region40
        $region39: #{tpu_custom_call.1} parent=35 // pred_region
          %s212 = sand.u32 %s28, 1
          %s213 = scalar_lea.sflag [#allocation3], %s212
          %s214 = sand.u32 %s28, 1
          %s215 = smul.addr %s214, 128
          %s216 = scalar_lea.vmem [#allocation2], %s215
          %s217 = smul.u32 8, %s18
          %s219 = ssub.s32 2048, 2048
          %220 = vsyncadd %s213, %s219
          %s221 = smul.addr %s217, 2
          %s222 = smul.addr %s221, 128
          %s223 = scalar_lea.hbm %s0, %s222
          %s224 = sshll.u32 %s216, 4
          %s225 = int_to_ptr.vmem [resolvable:$true] %s224
          %230 = dma.hbm_to_vmem [thread:$0]  %s223, 2048, %s225, %s213, 128, 128, 8
        $region40: #{tpu_custom_call.1} parent=35 // pred_fallthru
          _
      $region36: #{tpu_custom_call.1} parent=5 // pred_fallthru
        _
      %p231 = scmp.le.s32.totalorder 1, %s18
      %p232 = scmp.lt.s32.totalorder %s18, 3
      %p233 = pnand %p231, %p232
      %p234 = pneg %p233
      // Predicated region
      $region41: #{tpu_custom_call.1} parent=5 // pred_check
        _
      $region42: #{tpu_custom_call.1} parent=5 // pred_check_branch
        %236 = sbr.rel (%p233) target = $region44
      $region43: #{tpu_custom_call.1} parent=5 // pred_region
        %s237 = ssub.s32 %s18, 1
        %s238 = sand.u32 %s31, 1
        %s239 = scalar_lea.sflag [#allocation3], %s238
        %s240 = sand.u32 %s31, 1
        %s241 = smul.addr %s240, 128
        %s242 = scalar_lea.vmem [#allocation2], %s241
        // Predicated region
        $region45: #{tpu_custom_call.1} parent=43 // pred_check
          %p243 = pneg %p44
        $region46: #{tpu_custom_call.1} parent=43 // pred_check_branch
          %245 = sbr.rel (%p243) target = $region48
        $region47: #{tpu_custom_call.1} parent=43 // pred_region
          %246 = dma.done %s239, 2048
        $region48: #{tpu_custom_call.1} parent=43 // pred_fallthru
          _
        %s247 = sand.u32 %s31, 1
        %s248 = scalar_lea.sflag [#allocation3], %s247
        %s249 = sand.u32 %s31, 1
        %s250 = smul.addr %s249, 128
        %s251 = scalar_lea.vmem [#allocation2], %s250
        %p252 = pneg %p44
        %p253 = pneg %p41
        %p254 = pneg %p65
        %p255 = pneg %p62
        %p256 = pneg %p86
        %p257 = pneg %p83
        %p258 = pneg %p107
        %p259 = pneg %p104
        %p260 = pneg %p128
        %p261 = pneg %p125
        %p262 = pneg %p149
        %p263 = pneg %p146
        %p264 = pneg %p175
        %p265 = pneg %p172
        %s266 = sand.u32 %s162, 1
        %s267 = scalar_lea.sflag [#allocation4], %s266
        %s268 = sand.u32 %s162, 1
        %s269 = smul.addr %s268, 8
        %s270 = scalar_lea.vmem [#allocation5], %s269
        %s271 = smul.u32 8, %s23
        %v272 = vld [vmem:[%s242] sm:$0xff]
        %v273 = vld [vmem:[%s242 + $0x8] sm:$0xff]
        %v274 = vld [vmem:[%s242 + $0x10] sm:$0xff]
        %v275 = vld [vmem:[%s242 + $0x18] sm:$0xff]
        %v276 = vld [vmem:[%s242 + $0x20] sm:$0xff]
        %v277 = vld [vmem:[%s242 + $0x28] sm:$0xff]
        %v278 = vld [vmem:[%s242 + $0x30] sm:$0xff]
        %v279 = vld [vmem:[%s242 + $0x38] sm:$0xff]
        %v280 = vld [vmem:[%s242 + $0x40] sm:$0xff]
        %v281 = vld [vmem:[%s242 + $0x48] sm:$0xff]
        %v282 = vld [vmem:[%s242 + $0x50] sm:$0xff]
        %v283 = vld [vmem:[%s242 + $0x58] sm:$0xff]
        %v284 = vld [vmem:[%s242 + $0x60] sm:$0xff]
        %v285 = vld [vmem:[%s242 + $0x68] sm:$0xff]
        %v286 = vld [vmem:[%s242 + $0x70] sm:$0xff]
        %v287 = vld [vmem:[%s242 + $0x78] sm:$0xff]
        %v288 = vtanh.pop %v272
        %v289 = vtanh.pop %v273
        %v290 = vtanh.pop %v274
        %v291 = vtanh.pop %v275
        %v292 = vtanh.pop %v276
        %v293 = vtanh.pop %v277
        %v294 = vtanh.pop %v278
        %v295 = vtanh.pop %v279
        %v296 = vtanh.pop %v280
        %v297 = vtanh.pop %v281
        %v298 = vtanh.pop %v282
        %v299 = vtanh.pop %v283
        %v300 = vtanh.pop %v284
        %v301 = vtanh.pop %v285
        %v302 = vtanh.pop %v286
        %v303 = vtanh.pop %v287
        %v304 = vld [vmem:[%s1] sm:$0x1]
        %v306 = vlaneseq
        %v307 = vshrl.u32 %v306, 7
        %v308 = vsub.s32 0, %v307
        %v309 = vrot.slane %v304, %v308
        %v311 = vmul.f32 %v288, %v309
        %v312 = vmul.f32 %v289, %v309
        %v313 = vmul.f32 %v290, %v309
        %v314 = vmul.f32 %v291, %v309
        %v315 = vmul.f32 %v292, %v309
        %v316 = vmul.f32 %v293, %v309
        %v317 = vmul.f32 %v294, %v309
        %v318 = vmul.f32 %v295, %v309
        %v319 = vmul.f32 %v296, %v309
        %v320 = vmul.f32 %v297, %v309
        %v321 = vmul.f32 %v298, %v309
        %v322 = vmul.f32 %v299, %v309
        %v323 = vmul.f32 %v300, %v309
        %v324 = vmul.f32 %v301, %v309
        %v325 = vmul.f32 %v302, %v309
        %v326 = vmul.f32 %v303, %v309
        %vm327 = vcmask 261120
        %v328 = vsel %vm327, %v311, 0.0
        %329 = vadd.xlane.f32.xlu0 %v328
        %v330 = vpop.xlane.xlu0 %329
        %v331 = vsel %vm327, %v312, 0.0
        %332 = vadd.xlane.f32.xlu0 %v331
        %v333 = vpop.xlane.xlu0 %332
        %v334 = vsel %vm327, %v313, 0.0
        %335 = vadd.xlane.f32.xlu0 %v334
        %v336 = vpop.xlane.xlu0 %335
        %v337 = vsel %vm327, %v314, 0.0
        %338 = vadd.xlane.f32.xlu0 %v337
        %v339 = vpop.xlane.xlu0 %338
        %v340 = vsel %vm327, %v315, 0.0
        %341 = vadd.xlane.f32.xlu0 %v340
        %v342 = vpop.xlane.xlu0 %341
        %v343 = vsel %vm327, %v316, 0.0
        %344 = vadd.xlane.f32.xlu0 %v343
        %v345 = vpop.xlane.xlu0 %344
        %v346 = vsel %vm327, %v317, 0.0
        %347 = vadd.xlane.f32.xlu0 %v346
        %v348 = vpop.xlane.xlu0 %347
        %v349 = vsel %vm327, %v318, 0.0
        %350 = vadd.xlane.f32.xlu0 %v349
        %v351 = vpop.xlane.xlu0 %350
        %v352 = vsel %vm327, %v319, 0.0
        %353 = vadd.xlane.f32.xlu0 %v352
        %v354 = vpop.xlane.xlu0 %353
        %v355 = vsel %vm327, %v320, 0.0
        %356 = vadd.xlane.f32.xlu0 %v355
        %v357 = vpop.xlane.xlu0 %356
        %v358 = vsel %vm327, %v321, 0.0
        %359 = vadd.xlane.f32.xlu0 %v358
        %v360 = vpop.xlane.xlu0 %359
        %v361 = vsel %vm327, %v322, 0.0
        %362 = vadd.xlane.f32.xlu0 %v361
        %v363 = vpop.xlane.xlu0 %362
        %v364 = vsel %vm327, %v323, 0.0
        %365 = vadd.xlane.f32.xlu0 %v364
        %v366 = vpop.xlane.xlu0 %365
        %v367 = vsel %vm327, %v324, 0.0
        %368 = vadd.xlane.f32.xlu0 %v367
        %v369 = vpop.xlane.xlu0 %368
        %v370 = vsel %vm327, %v325, 0.0
        %371 = vadd.xlane.f32.xlu0 %v370
        %v372 = vpop.xlane.xlu0 %371
        %v373 = vsel %vm327, %v326, 0.0
        %374 = vadd.xlane.f32.xlu0 %v373
        %v375 = vpop.xlane.xlu0 %374
        %v392 = vlaneseq
        %v393 = vand.u32 %v392, 127
        %v394 = vlaneseq
        %v395 = vshrl.u32 %v394, 7
        %v396 = vsub.s32 %v393, %v395
        %v397 = vrot.slane %v330, %v396
        %v398 = vadd.s32 %v393, 4294967288
        %v399 = vlaneseq
        %v400 = vshrl.u32 %v399, 7
        %v401 = vsub.s32 %v398, %v400
        %v402 = vrot.slane %v333, %v401
        %vm403 = vcmask 130112
        %v404 = vsel %vm403, %v402, %v397
        %v405 = vlaneseq
        %v406 = vshrl.u32 %v405, 7
        %v407 = vsub.s32 %v393, %v406
        %v408 = vrot.slane %v336, %v407
        %v409 = vlaneseq
        %v410 = vshrl.u32 %v409, 7
        %v411 = vsub.s32 %v398, %v410
        %v412 = vrot.slane %v339, %v411
        %v413 = vsel %vm403, %v412, %v408
        %v414 = vlaneseq
        %v415 = vshrl.u32 %v414, 7
        %v416 = vsub.s32 %v393, %v415
        %v417 = vrot.slane %v342, %v416
        %v418 = vlaneseq
        %v419 = vshrl.u32 %v418, 7
        %v420 = vsub.s32 %v398, %v419
        %v421 = vrot.slane %v345, %v420
        %v422 = vsel %vm403, %v421, %v417
        %v423 = vlaneseq
        %v424 = vshrl.u32 %v423, 7
        %v425 = vsub.s32 %v393, %v424
        %v426 = vrot.slane %v348, %v425
        %v427 = vlaneseq
        %v428 = vshrl.u32 %v427, 7
        %v429 = vsub.s32 %v398, %v428
        %v430 = vrot.slane %v351, %v429
        %v431 = vsel %vm403, %v430, %v426
        %v432 = vlaneseq
        %v433 = vshrl.u32 %v432, 7
        %v434 = vsub.s32 %v393, %v433
        %v435 = vrot.slane %v354, %v434
        %v436 = vlaneseq
        %v437 = vshrl.u32 %v436, 7
        %v438 = vsub.s32 %v398, %v437
        %v439 = vrot.slane %v357, %v438
        %v440 = vsel %vm403, %v439, %v435
        %v441 = vlaneseq
        %v442 = vshrl.u32 %v441, 7
        %v443 = vsub.s32 %v393, %v442
        %v444 = vrot.slane %v360, %v443
        %v445 = vlaneseq
        %v446 = vshrl.u32 %v445, 7
        %v447 = vsub.s32 %v398, %v446
        %v448 = vrot.slane %v363, %v447
        %v449 = vsel %vm403, %v448, %v444
        %v450 = vlaneseq
        %v451 = vshrl.u32 %v450, 7
        %v452 = vsub.s32 %v393, %v451
        %v453 = vrot.slane %v366, %v452
        %v454 = vlaneseq
        %v455 = vshrl.u32 %v454, 7
        %v456 = vsub.s32 %v398, %v455
        %v457 = vrot.slane %v369, %v456
        %v458 = vsel %vm403, %v457, %v453
        %v459 = vlaneseq
        %v460 = vshrl.u32 %v459, 7
        %v461 = vsub.s32 %v393, %v460
        %v462 = vrot.slane %v372, %v461
        %v463 = vlaneseq
        %v464 = vshrl.u32 %v463, 7
        %v465 = vsub.s32 %v398, %v464
        %v466 = vrot.slane %v375, %v465
        %v467 = vsel %vm403, %v466, %v462
        %vm468 = vcmask 1041409
        %v469 = vsel %vm468, %v413, %v404
        %vm470 = vcmask 1042434
        %v471 = vsel %vm470, %v422, %v469
        %vm472 = vcmask 1043459
        %v473 = vsel %vm472, %v431, %v471
        %vm474 = vcmask 1044484
        %v475 = vsel %vm474, %v440, %v473
        %vm476 = vcmask 1045509
        %v477 = vsel %vm476, %v449, %v475
        %vm478 = vcmask 1046534
        %v479 = vsel %vm478, %v458, %v477
        %vm480 = vcmask 1047559
        %v481 = vsel %vm480, %v467, %v479
        %vm483 = vcmask 130048
        %v484 = vsel %vm483, %v481, -inf
        %485 = vmax.xlane.f32.xlu0 %v484
        %v486 = vpop.xlane.xlu0 %485
        %v488 = vlaneseq
        %v489 = vshrl.u32 %v488, 7
        %v490 = vsub.s32 0, %v489
        %v491 = vrot.slane %v486, %v490
        %v492 = vlaneseq
        %v493 = vshrl.u32 %v492, 7
        %v494 = vsub.s32 1, %v493
        %v495 = vrot.slane %v486, %v494
        %v496 = vlaneseq
        %v497 = vshrl.u32 %v496, 7
        %v498 = vsub.s32 2, %v497
        %v499 = vrot.slane %v486, %v498
        %v500 = vlaneseq
        %v501 = vshrl.u32 %v500, 7
        %v502 = vsub.s32 3, %v501
        %v503 = vrot.slane %v486, %v502
        %v504 = vlaneseq
        %v505 = vshrl.u32 %v504, 7
        %v506 = vsub.s32 4, %v505
        %v507 = vrot.slane %v486, %v506
        %v508 = vlaneseq
        %v509 = vshrl.u32 %v508, 7
        %v510 = vsub.s32 5, %v509
        %v511 = vrot.slane %v486, %v510
        %v512 = vlaneseq
        %v513 = vshrl.u32 %v512, 7
        %v514 = vsub.s32 6, %v513
        %v515 = vrot.slane %v486, %v514
        %v516 = vlaneseq
        %v517 = vshrl.u32 %v516, 7
        %v518 = vsub.s32 7, %v517
        %v519 = vrot.slane %v486, %v518
        %v528 = vsub.f32 %v330, %v491
        %v529 = vsub.f32 %v333, %v491
        %v530 = vsub.f32 %v336, %v495
        %v531 = vsub.f32 %v339, %v495
        %v532 = vsub.f32 %v342, %v499
        %v533 = vsub.f32 %v345, %v499
        %v534 = vsub.f32 %v348, %v503
        %v535 = vsub.f32 %v351, %v503
        %v536 = vsub.f32 %v354, %v507
        %v537 = vsub.f32 %v357, %v507
        %v538 = vsub.f32 %v360, %v511
        %v539 = vsub.f32 %v363, %v511
        %v540 = vsub.f32 %v366, %v515
        %v541 = vsub.f32 %v369, %v515
        %v542 = vsub.f32 %v372, %v519
        %v543 = vsub.f32 %v375, %v519
        %v544 = vmul.f32 %v528, 1.442695
        %v545 = vpow.pop %v544
        %v546 = vmul.f32 %v529, 1.442695
        %v547 = vpow.pop %v546
        %v548 = vmul.f32 %v530, 1.442695
        %v549 = vpow.pop %v548
        %v550 = vmul.f32 %v531, 1.442695
        %v551 = vpow.pop %v550
        %v552 = vmul.f32 %v532, 1.442695
        %v553 = vpow.pop %v552
        %v554 = vmul.f32 %v533, 1.442695
        %v555 = vpow.pop %v554
        %v556 = vmul.f32 %v534, 1.442695
        %v557 = vpow.pop %v556
        %v558 = vmul.f32 %v535, 1.442695
        %v559 = vpow.pop %v558
        %v560 = vmul.f32 %v536, 1.442695
        %v561 = vpow.pop %v560
        %v562 = vmul.f32 %v537, 1.442695
        %v563 = vpow.pop %v562
        %v564 = vmul.f32 %v538, 1.442695
        %v565 = vpow.pop %v564
        %v566 = vmul.f32 %v539, 1.442695
        %v567 = vpow.pop %v566
        %v568 = vmul.f32 %v540, 1.442695
        %v569 = vpow.pop %v568
        %v570 = vmul.f32 %v541, 1.442695
        %v571 = vpow.pop %v570
        %v572 = vmul.f32 %v542, 1.442695
        %v573 = vpow.pop %v572
        %v574 = vmul.f32 %v543, 1.442695
        %v575 = vpow.pop %v574
        %592 = vset.pattern.permute.xlu0 0
        %593 = vperm.xlu0 %592, %v545
        %v594 = vpop.permute.xlu0 %593
        %595 = vset.pattern.permute.xlu0 0
        %596 = vperm.xlu0 %595, %v547
        %v597 = vpop.permute.xlu0 %596
        %598 = vset.pattern.permute.xlu0 0
        %599 = vperm.xlu0 %598, %v549
        %v600 = vpop.permute.xlu0 %599
        %601 = vset.pattern.permute.xlu0 0
        %602 = vperm.xlu0 %601, %v551
        %v603 = vpop.permute.xlu0 %602
        %604 = vset.pattern.permute.xlu0 0
        %605 = vperm.xlu0 %604, %v553
        %v606 = vpop.permute.xlu0 %605
        %607 = vset.pattern.permute.xlu0 0
        %608 = vperm.xlu0 %607, %v555
        %v609 = vpop.permute.xlu0 %608
        %610 = vset.pattern.permute.xlu0 0
        %611 = vperm.xlu0 %610, %v557
        %v612 = vpop.permute.xlu0 %611
        %613 = vset.pattern.permute.xlu0 0
        %614 = vperm.xlu0 %613, %v559
        %v615 = vpop.permute.xlu0 %614
        %616 = vset.pattern.permute.xlu0 0
        %617 = vperm.xlu0 %616, %v561
        %v618 = vpop.permute.xlu0 %617
        %619 = vset.pattern.permute.xlu0 0
        %620 = vperm.xlu0 %619, %v563
        %v621 = vpop.permute.xlu0 %620
        %622 = vset.pattern.permute.xlu0 0
        %623 = vperm.xlu0 %622, %v565
        %v624 = vpop.permute.xlu0 %623
        %625 = vset.pattern.permute.xlu0 0
        %626 = vperm.xlu0 %625, %v567
        %v627 = vpop.permute.xlu0 %626
        %628 = vset.pattern.permute.xlu0 0
        %629 = vperm.xlu0 %628, %v569
        %v630 = vpop.permute.xlu0 %629
        %631 = vset.pattern.permute.xlu0 0
        %632 = vperm.xlu0 %631, %v571
        %v633 = vpop.permute.xlu0 %632
        %634 = vset.pattern.permute.xlu0 0
        %635 = vperm.xlu0 %634, %v573
        %v636 = vpop.permute.xlu0 %635
        %637 = vset.pattern.permute.xlu0 0
        %638 = vperm.xlu0 %637, %v575
        %v639 = vpop.permute.xlu0 %638
        %v640 = vlaneseq
        %v641 = vshrl.u32 %v640, 7
        %v642 = vsub.s32 %v393, %v641
        %v643 = vrot.slane %v594, %v642
        %v644 = vlaneseq
        %v645 = vshrl.u32 %v644, 7
        %v646 = vsub.s32 %v398, %v645
        %v647 = vrot.slane %v597, %v646
        %v648 = vsel %vm403, %v647, %v643
        %v649 = vlaneseq
        %v650 = vshrl.u32 %v649, 7
        %v651 = vsub.s32 %v393, %v650
        %v652 = vrot.slane %v600, %v651
        %v653 = vlaneseq
        %v654 = vshrl.u32 %v653, 7
        %v655 = vsub.s32 %v398, %v654
        %v656 = vrot.slane %v603, %v655
        %v657 = vsel %vm403, %v656, %v652
        %v658 = vlaneseq
        %v659 = vshrl.u32 %v658, 7
        %v660 = vsub.s32 %v393, %v659
        %v661 = vrot.slane %v606, %v660
        %v662 = vlaneseq
        %v663 = vshrl.u32 %v662, 7
        %v664 = vsub.s32 %v398, %v663
        %v665 = vrot.slane %v609, %v664
        %v666 = vsel %vm403, %v665, %v661
        %v667 = vlaneseq
        %v668 = vshrl.u32 %v667, 7
        %v669 = vsub.s32 %v393, %v668
        %v670 = vrot.slane %v612, %v669
        %v671 = vlaneseq
        %v672 = vshrl.u32 %v671, 7
        %v673 = vsub.s32 %v398, %v672
        %v674 = vrot.slane %v615, %v673
        %v675 = vsel %vm403, %v674, %v670
        %v676 = vlaneseq
        %v677 = vshrl.u32 %v676, 7
        %v678 = vsub.s32 %v393, %v677
        %v679 = vrot.slane %v618, %v678
        %v680 = vlaneseq
        %v681 = vshrl.u32 %v680, 7
        %v682 = vsub.s32 %v398, %v681
        %v683 = vrot.slane %v621, %v682
        %v684 = vsel %vm403, %v683, %v679
        %v685 = vlaneseq
        %v686 = vshrl.u32 %v685, 7
        %v687 = vsub.s32 %v393, %v686
        %v688 = vrot.slane %v624, %v687
        %v689 = vlaneseq
        %v690 = vshrl.u32 %v689, 7
        %v691 = vsub.s32 %v398, %v690
        %v692 = vrot.slane %v627, %v691
        %v693 = vsel %vm403, %v692, %v688
        %v694 = vlaneseq
        %v695 = vshrl.u32 %v694, 7
        %v696 = vsub.s32 %v393, %v695
        %v697 = vrot.slane %v630, %v696
        %v698 = vlaneseq
        %v699 = vshrl.u32 %v698, 7
        %v700 = vsub.s32 %v398, %v699
        %v701 = vrot.slane %v633, %v700
        %v702 = vsel %vm403, %v701, %v697
        %v703 = vlaneseq
        %v704 = vshrl.u32 %v703, 7
        %v705 = vsub.s32 %v393, %v704
        %v706 = vrot.slane %v636, %v705
        %v707 = vlaneseq
        %v708 = vshrl.u32 %v707, 7
        %v709 = vsub.s32 %v398, %v708
        %v710 = vrot.slane %v639, %v709
        %v711 = vsel %vm403, %v710, %v706
        %v712 = vsel %vm468, %v657, %v648
        %v713 = vsel %vm470, %v666, %v712
        %v714 = vsel %vm472, %v675, %v713
        %v715 = vsel %vm474, %v684, %v714
        %v716 = vsel %vm476, %v693, %v715
        %v717 = vsel %vm478, %v702, %v716
        %v718 = vsel %vm480, %v711, %v717
        %v720 = vsel %vm483, %v718, 0.0
        %721 = vadd.xlane.f32.xlu0 %v720
        %v722 = vpop.xlane.xlu0 %721
        %v723 = vrcp.pop %v722
        %v725 = vlaneseq
        %v726 = vshrl.u32 %v725, 7
        %v727 = vsub.s32 0, %v726
        %v728 = vrot.slane %v723, %v727
        %v729 = vlaneseq
        %v730 = vshrl.u32 %v729, 7
        %v731 = vsub.s32 1, %v730
        %v732 = vrot.slane %v723, %v731
        %v733 = vlaneseq
        %v734 = vshrl.u32 %v733, 7
        %v735 = vsub.s32 2, %v734
        %v736 = vrot.slane %v723, %v735
        %v737 = vlaneseq
        %v738 = vshrl.u32 %v737, 7
        %v739 = vsub.s32 3, %v738
        %v740 = vrot.slane %v723, %v739
        %v741 = vlaneseq
        %v742 = vshrl.u32 %v741, 7
        %v743 = vsub.s32 4, %v742
        %v744 = vrot.slane %v723, %v743
        %v745 = vlaneseq
        %v746 = vshrl.u32 %v745, 7
        %v747 = vsub.s32 5, %v746
        %v748 = vrot.slane %v723, %v747
        %v749 = vlaneseq
        %v750 = vshrl.u32 %v749, 7
        %v751 = vsub.s32 6, %v750
        %v752 = vrot.slane %v723, %v751
        %v753 = vlaneseq
        %v754 = vshrl.u32 %v753, 7
        %v755 = vsub.s32 7, %v754
        %v756 = vrot.slane %v723, %v755
        %v765 = vmul.f32 %v545, %v728
        %v766 = vmul.f32 %v547, %v728
        %v767 = vmul.f32 %v549, %v732
        %v768 = vmul.f32 %v551, %v732
        %v769 = vmul.f32 %v553, %v736
        %v770 = vmul.f32 %v555, %v736
        %v771 = vmul.f32 %v557, %v740
        %v772 = vmul.f32 %v559, %v740
        %v773 = vmul.f32 %v561, %v744
        %v774 = vmul.f32 %v563, %v744
        %v775 = vmul.f32 %v565, %v748
        %v776 = vmul.f32 %v567, %v748
        %v777 = vmul.f32 %v569, %v752
        %v778 = vmul.f32 %v571, %v752
        %v779 = vmul.f32 %v573, %v756
        %v780 = vmul.f32 %v575, %v756
        %782 = vset.pattern.permute.xlu0 0
        %783 = vperm.xlu0 %782, %v765
        %v784 = vpop.permute.xlu0 %783
        %787 = vset.pattern.permute.xlu0 0
        %788 = vperm.xlu0 %787, %v766
        %v789 = vpop.permute.xlu0 %788
        %792 = vset.pattern.permute.xlu0 0
        %793 = vperm.xlu0 %792, %v767
        %v794 = vpop.permute.xlu0 %793
        %797 = vset.pattern.permute.xlu0 0
        %798 = vperm.xlu0 %797, %v768
        %v799 = vpop.permute.xlu0 %798
        %802 = vset.pattern.permute.xlu0 0
        %803 = vperm.xlu0 %802, %v769
        %v804 = vpop.permute.xlu0 %803
        %807 = vset.pattern.permute.xlu0 0
        %808 = vperm.xlu0 %807, %v770
        %v809 = vpop.permute.xlu0 %808
        %812 = vset.pattern.permute.xlu0 0
        %813 = vperm.xlu0 %812, %v771
        %v814 = vpop.permute.xlu0 %813
        %817 = vset.pattern.permute.xlu0 0
        %818 = vperm.xlu0 %817, %v772
        %v819 = vpop.permute.xlu0 %818
        %822 = vset.pattern.permute.xlu0 0
        %823 = vperm.xlu0 %822, %v773
        %v824 = vpop.permute.xlu0 %823
        %827 = vset.pattern.permute.xlu0 0
        %828 = vperm.xlu0 %827, %v774
        %v829 = vpop.permute.xlu0 %828
        %832 = vset.pattern.permute.xlu0 0
        %833 = vperm.xlu0 %832, %v775
        %v834 = vpop.permute.xlu0 %833
        %837 = vset.pattern.permute.xlu0 0
        %838 = vperm.xlu0 %837, %v776
        %v839 = vpop.permute.xlu0 %838
        %842 = vset.pattern.permute.xlu0 0
        %843 = vperm.xlu0 %842, %v777
        %v844 = vpop.permute.xlu0 %843
        %847 = vset.pattern.permute.xlu0 0
        %848 = vperm.xlu0 %847, %v778
        %v849 = vpop.permute.xlu0 %848
        %852 = vset.pattern.permute.xlu0 0
        %853 = vperm.xlu0 %852, %v779
        %v854 = vpop.permute.xlu0 %853
        %857 = vset.pattern.permute.xlu0 0
        %858 = vperm.xlu0 %857, %v780
        %v859 = vpop.permute.xlu0 %858
        %v861 = vmul.f32 %v784, %v272
        %v862 = vmul.f32 %v789, %v273
        %v863 = vmul.f32 %v794, %v274
        %v864 = vmul.f32 %v799, %v275
        %v865 = vmul.f32 %v804, %v276
        %v866 = vmul.f32 %v809, %v277
        %v867 = vmul.f32 %v814, %v278
        %v868 = vmul.f32 %v819, %v279
        %v869 = vmul.f32 %v824, %v280
        %v870 = vmul.f32 %v829, %v281
        %v871 = vmul.f32 %v834, %v282
        %v872 = vmul.f32 %v839, %v283
        %v873 = vmul.f32 %v844, %v284
        %v874 = vmul.f32 %v849, %v285
        %v875 = vmul.f32 %v854, %v286
        %v876 = vmul.f32 %v859, %v287
        %v877 = vsel %vm327, %v861, 0.0
        %v878 = vsel %vm327, %v862, 0.0
        %v879 = vadd.f32 %v877, %v878
        %v880 = vrot.slane %v879, 4
        %v881 = vadd.f32 %v879, %v880
        %v882 = vrot.slane %v881, 2
        %v883 = vadd.f32 %v881, %v882
        %v884 = vrot.slane %v883, 1
        %v885 = vadd.f32 %v883, %v884
        %v886 = vsel %vm327, %v863, 0.0
        %v887 = vsel %vm327, %v864, 0.0
        %v888 = vadd.f32 %v886, %v887
        %v889 = vrot.slane %v888, 4
        %v890 = vadd.f32 %v888, %v889
        %v891 = vrot.slane %v890, 2
        %v892 = vadd.f32 %v890, %v891
        %v893 = vrot.slane %v892, 1
        %v894 = vadd.f32 %v892, %v893
        %v895 = vsel %vm327, %v865, 0.0
        %v896 = vsel %vm327, %v866, 0.0
        %v897 = vadd.f32 %v895, %v896
        %v898 = vrot.slane %v897, 4
        %v899 = vadd.f32 %v897, %v898
        %v900 = vrot.slane %v899, 2
        %v901 = vadd.f32 %v899, %v900
        %v902 = vrot.slane %v901, 1
        %v903 = vadd.f32 %v901, %v902
        %v904 = vsel %vm327, %v867, 0.0
        %v905 = vsel %vm327, %v868, 0.0
        %v906 = vadd.f32 %v904, %v905
        %v907 = vrot.slane %v906, 4
        %v908 = vadd.f32 %v906, %v907
        %v909 = vrot.slane %v908, 2
        %v910 = vadd.f32 %v908, %v909
        %v911 = vrot.slane %v910, 1
        %v912 = vadd.f32 %v910, %v911
        %v913 = vsel %vm327, %v869, 0.0
        %v914 = vsel %vm327, %v870, 0.0
        %v915 = vadd.f32 %v913, %v914
        %v916 = vrot.slane %v915, 4
        %v917 = vadd.f32 %v915, %v916
        %v918 = vrot.slane %v917, 2
        %v919 = vadd.f32 %v917, %v918
        %v920 = vrot.slane %v919, 1
        %v921 = vadd.f32 %v919, %v920
        %v922 = vsel %vm327, %v871, 0.0
        %v923 = vsel %vm327, %v872, 0.0
        %v924 = vadd.f32 %v922, %v923
        %v925 = vrot.slane %v924, 4
        %v926 = vadd.f32 %v924, %v925
        %v927 = vrot.slane %v926, 2
        %v928 = vadd.f32 %v926, %v927
        %v929 = vrot.slane %v928, 1
        %v930 = vadd.f32 %v928, %v929
        %v931 = vsel %vm327, %v873, 0.0
        %v932 = vsel %vm327, %v874, 0.0
        %v933 = vadd.f32 %v931, %v932
        %v934 = vrot.slane %v933, 4
        %v935 = vadd.f32 %v933, %v934
        %v936 = vrot.slane %v935, 2
        %v937 = vadd.f32 %v935, %v936
        %v938 = vrot.slane %v937, 1
        %v939 = vadd.f32 %v937, %v938
        %v940 = vsel %vm327, %v875, 0.0
        %v941 = vsel %vm327, %v876, 0.0
        %v942 = vadd.f32 %v940, %v941
        %v943 = vrot.slane %v942, 4
        %v944 = vadd.f32 %v942, %v943
        %v945 = vrot.slane %v944, 2
        %v946 = vadd.f32 %v944, %v945
        %v947 = vrot.slane %v946, 1
        %v948 = vadd.f32 %v946, %v947
        %v949 = vld [vmem:[%s2] sm:$0xff]
        %v950 = vld [vmem:[%s2 + $0x8] sm:$0xff]
        %v951 = vld [vmem:[%s2 + $0x10] sm:$0xff]
        %v952 = vld [vmem:[%s2 + $0x18] sm:$0xff]
        %v953 = vld [vmem:[%s3] sm:$0x1]
        %v955 = vlaneseq
        %v956 = vshrl.u32 %v955, 7
        %v957 = vsub.s32 0, %v956
        %v958 = vrot.slane %v953, %v957
        %v968 = vsel %vm468, %v894, %v885
        %v969 = vsel %vm470, %v903, %v968
        %v970 = vsel %vm472, %v912, %v969
        %v971 = vsel %vm474, %v921, %v970
        %v972 = vsel %vm476, %v930, %v971
        %v973 = vsel %vm478, %v939, %v972
        %v974 = vsel %vm480, %v948, %v973
        %v975 = vsel %vm327, %v974, 0
        %977 = vmatprep.subr.mxu0 0.0
        %978 = vmatpush1.msra.mxu0 %v949
        %979 = vmatprep.subr.mxu0 0.0
        %980 = vmatpush1.msra.mxu0 %v950
        %981 = vmatprep.subr.mxu0 0.0
        %982 = vmatpush1.msra.mxu0 %v951
        %983 = vmatprep.subr.mxu0 0.0
        %984 = vmatpush1.msra.mxu0 %v952
        %985 = vmatprep.subr.mxu0 0.0
        %986 = vmatpush1.msra.mxu0 0.0
        %987 = vmatprep.subr.mxu0 0.0
        %988 = vmatpush1.msra.mxu0 0.0
        %989 = vmatprep.subr.mxu0 0.0
        %990 = vmatpush1.msra.mxu0 0.0
        %991 = vmatprep.subr.mxu0 0.0
        %992 = vmatpush1.msra.mxu0 0.0
        %993 = vmatprep.subr.mxu0 0.0
        %994 = vmatpush1.msra.mxu0 0.0
        %995 = vmatprep.subr.mxu0 0.0
        %996 = vmatpush1.msra.mxu0 0.0
        %997 = vmatprep.subr.mxu0 0.0
        %998 = vmatpush1.msra.mxu0 0.0
        %999 = vmatprep.subr.mxu0 0.0
        %1000 = vmatpush1.msra.mxu0 0.0
        %1001 = vmatprep.subr.mxu0 0.0
        %1002 = vmatpush1.msra.mxu0 0.0
        %1003 = vmatprep.subr.mxu0 0.0
        %1004 = vmatpush1.msra.mxu0 0.0
        %1005 = vmatprep.subr.mxu0 0.0
        %1006 = vmatpush1.msra.mxu0 0.0
        %1007 = vmatprep.subr.mxu0 0.0
        %1008 = vmatpush1.msra.mxu0 0.0
        %1009 = vmatprep.subr.mxu0 0.0
        %1010 = vmatpush1.msra.mxu0 0.0
        %1011 = vmatprep.subr.mxu0 0.0
        %1012 = vmatpush1.msra.mxu0 0.0
        %1013 = vmatprep.subr.mxu0 0.0
        %1014 = vmatpush1.msra.mxu0 0.0
        %1015 = vmatprep.subr.mxu0 0.0
        %1016 = vmatpush1.msra.mxu0 0.0
        %1017 = vmatprep.subr.mxu0 0.0
        %1018 = vmatpush1.msra.mxu0 0.0
        %1019 = vmatprep.subr.mxu0 0.0
        %1020 = vmatpush1.msra.mxu0 0.0
        %1021 = vmatprep.subr.mxu0 0.0
        %1022 = vmatpush1.msra.mxu0 0.0
        %1023 = vmatprep.subr.mxu0 0.0
        %1024 = vmatpush1.msra.mxu0 0.0
        %1025 = vmatprep.subr.mxu0 0.0
        %1026 = vmatpush1.msra.mxu0 0.0
        %1027 = vmatprep.subr.mxu0 0.0
        %1028 = vmatpush1.msra.mxu0 0.0
        %1029 = vmatprep.subr.mxu0 0.0
        %1030 = vmatpush1.msra.mxu0 0.0
        %1031 = vmatprep.subr.mxu0 0.0
        %1032 = vmatpush1.msra.mxu0 0.0
        %1033 = vmatprep.subr.mxu0 0.0
        %1034 = vmatpush1.msra.mxu0 0.0
        %1035 = vmatprep.subr.mxu0 0.0
        %1036 = vmatpush1.msra.mxu0 0.0
        %1037 = vmatprep.subr.mxu0 0.0
        %1038 = vmatpush1.msra.mxu0 0.0
        %1039 = vmatprep.subr.mxu0 0.0
        %1040 = vmatpush1.msra.mxu0 0.0
        %1041 = vmatprep.mubr.f32.mxu0 0.0
        %1042 = vmatmul.mubr.f32.gmra.mrb[0].mxu0 %v975
        %v1043 = vpop.f32.mrb[0].mxu0
        %v1044 = vadd.f32 %v958, %v1043
        %v1045 = vpop.f32.mrb[0].mxu0
        %1046 = vdwg.mxu0
        %v1047 = vmax.f32 %v1044, 0.0
        %v1048 = vld [vmem:[%s4] sm:$0xff]
        %v1049 = vld [vmem:[%s4 + $0x8] sm:$0xff]
        %v1050 = vld [vmem:[%s5] sm:$0x1]
        %v1052 = vlaneseq
        %v1053 = vshrl.u32 %v1052, 7
        %v1054 = vsub.s32 0, %v1053
        %v1055 = vrot.slane %v1050, %v1054
        %v1058 = vsel %vm483, %v1047, 0
        %1060 = vmatprep.subr.mxu0 0.0
        %1061 = vmatpush1.msra.mxu0 %v1048
        %1062 = vmatprep.subr.mxu0 0.0
        %1063 = vmatpush1.msra.mxu0 %v1049
        %1064 = vmatprep.subr.mxu0 0.0
        %1065 = vmatpush1.msra.mxu0 0.0
        %1066 = vmatprep.subr.mxu0 0.0
        %1067 = vmatpush1.msra.mxu0 0.0
        %1068 = vmatprep.subr.mxu0 0.0
        %1069 = vmatpush1.msra.mxu0 0.0
        %1070 = vmatprep.subr.mxu0 0.0
        %1071 = vmatpush1.msra.mxu0 0.0
        %1072 = vmatprep.subr.mxu0 0.0
        %1073 = vmatpush1.msra.mxu0 0.0
        %1074 = vmatprep.subr.mxu0 0.0
        %1075 = vmatpush1.msra.mxu0 0.0
        %1076 = vmatprep.subr.mxu0 0.0
        %1077 = vmatpush1.msra.mxu0 0.0
        %1078 = vmatprep.subr.mxu0 0.0
        %1079 = vmatpush1.msra.mxu0 0.0
        %1080 = vmatprep.subr.mxu0 0.0
        %1081 = vmatpush1.msra.mxu0 0.0
        %1082 = vmatprep.subr.mxu0 0.0
        %1083 = vmatpush1.msra.mxu0 0.0
        %1084 = vmatprep.subr.mxu0 0.0
        %1085 = vmatpush1.msra.mxu0 0.0
        %1086 = vmatprep.subr.mxu0 0.0
        %1087 = vmatpush1.msra.mxu0 0.0
        %1088 = vmatprep.subr.mxu0 0.0
        %1089 = vmatpush1.msra.mxu0 0.0
        %1090 = vmatprep.subr.mxu0 0.0
        %1091 = vmatpush1.msra.mxu0 0.0
        %1092 = vmatprep.subr.mxu0 0.0
        %1093 = vmatpush1.msra.mxu0 0.0
        %1094 = vmatprep.subr.mxu0 0.0
        %1095 = vmatpush1.msra.mxu0 0.0
        %1096 = vmatprep.subr.mxu0 0.0
        %1097 = vmatpush1.msra.mxu0 0.0
        %1098 = vmatprep.subr.mxu0 0.0
        %1099 = vmatpush1.msra.mxu0 0.0
        %1100 = vmatprep.subr.mxu0 0.0
        %1101 = vmatpush1.msra.mxu0 0.0
        %1102 = vmatprep.subr.mxu0 0.0
        %1103 = vmatpush1.msra.mxu0 0.0
        %1104 = vmatprep.subr.mxu0 0.0
        %1105 = vmatpush1.msra.mxu0 0.0
        %1106 = vmatprep.subr.mxu0 0.0
        %1107 = vmatpush1.msra.mxu0 0.0
        %1108 = vmatprep.subr.mxu0 0.0
        %1109 = vmatpush1.msra.mxu0 0.0
        %1110 = vmatprep.subr.mxu0 0.0
        %1111 = vmatpush1.msra.mxu0 0.0
        %1112 = vmatprep.subr.mxu0 0.0
        %1113 = vmatpush1.msra.mxu0 0.0
        %1114 = vmatprep.subr.mxu0 0.0
        %1115 = vmatpush1.msra.mxu0 0.0
        %1116 = vmatprep.subr.mxu0 0.0
        %1117 = vmatpush1.msra.mxu0 0.0
        %1118 = vmatprep.subr.mxu0 0.0
        %1119 = vmatpush1.msra.mxu0 0.0
        %1120 = vmatprep.subr.mxu0 0.0
        %1121 = vmatpush1.msra.mxu0 0.0
        %1122 = vmatprep.subr.mxu0 0.0
        %1123 = vmatpush1.msra.mxu0 0.0
        %1124 = vmatprep.mubr.f32.mxu0 0.0
        %1125 = vmatmul.mubr.f32.gmra.mrb[0].mxu0 %v1058
        %v1126 = vpop.f32.mrb[0].mxu0
        %v1127 = vadd.f32 %v1055, %v1126
        %v1128 = vpop.f32.mrb[0].mxu0
        %1129 = vdwg.mxu0
        %1130 = vst [vmem:[%s270] sm:$0xff] %v1127
        %s1131 = sand.u32 %s162, 1
        %s1132 = scalar_lea.sflag [#allocation4], %s1131
        %s1133 = sand.u32 %s162, 1
        %s1134 = smul.addr %s1133, 8
        %s1135 = scalar_lea.vmem [#allocation5], %s1134
        // Predicated region
        $region49: #{tpu_custom_call.1} parent=43 // pred_check
          %p1136 = pneg %p172
        $region50: #{tpu_custom_call.1} parent=43 // pred_check_branch
          %1138 = sbr.rel (%p1136) target = $region52
        $region51: #{tpu_custom_call.1} parent=43 // pred_region
          %s1140 = ssub.s32 128, 128
          %1141 = vsyncadd %s1132, %s1140
          %s1142 = smul.addr %s23, 128
          %s1143 = scalar_lea.hbm %s6, %s1142
          %s1145 = sshll.u32 %s1135, 4
          %s1146 = int_to_ptr.vmem [resolvable:$true] %s1145
          %1148 = dma.vmem_to_hbm [thread:$0]  %s1146, 128, %s1143, %s1132
        $region52: #{tpu_custom_call.1} parent=43 // pred_fallthru
          _
      $region44: #{tpu_custom_call.1} parent=5 // pred_fallthru
        _
      %p1149 = scmp.le.s32.totalorder 2, %s18
      // Predicated region
      $region53: #{tpu_custom_call.1} parent=5 // pred_check
        %p1150 = pneg %p1149
      $region54: #{tpu_custom_call.1} parent=5 // pred_check_branch
        %1152 = sbr.rel (%p1150) target = $region56
      $region55: #{tpu_custom_call.1} parent=5 // pred_region
        %s1153 = ssub.s32 %s18, 2
        // Predicated region
        $region57: #{tpu_custom_call.1} parent=55 // pred_check
          %p1154 = pneg %p178
        $region58: #{tpu_custom_call.1} parent=55 // pred_check_branch
          %1156 = sbr.rel (%p1154) target = $region60
        $region59: #{tpu_custom_call.1} parent=55 // pred_region
          %s1157 = sand.u32 %s163, 1
          %s1158 = scalar_lea.sflag [#allocation4], %s1157
          %s1159 = sand.u32 %s163, 1
          %s1160 = smul.addr %s1159, 8
          %s1161 = scalar_lea.vmem [#allocation5], %s1160
          %1162 = dma.done %s1158, 128
        $region60: #{tpu_custom_call.1} parent=55 // pred_fallthru
          _
      $region56: #{tpu_custom_call.1} parent=5 // pred_fallthru
        _
    $region6: #{tpu_custom_call.1} parent=1 // loop_footer
      %s22 = sadd.s32 1, %s18
    $region7: #{tpu_custom_call.1} parent=1 // loop_footer_branch
      %17 = sbr.rel target = $region3
    $region8: #{tpu_custom_call.1} parent=1 // loop_exit
      _
    %1163 = vsyncpa [#allocation3], 1
    %s1164 = scalar_lea.sflag [#allocation3], 1
    %1165 = vsyncpa %s1164, 1
    %1166 = vsyncpa [#allocation4], 1
    %s1167 = scalar_lea.sflag [#allocation4], 1
    %1168 = vsyncpa %s1167, 1

</llo_original>
